<compile_context>
chip_gen: v7x
topology: tpu7x:2x2x1
jax: 0.10.0
libtpu: 0.0.40
codegen_flags: <defaults>
</compile_context>

<pallas_src>
import math

import jax
import jax.numpy as jnp
from jax import lax
from jax.experimental import pallas as pl
from jax.experimental.pallas import tpu as pltpu


def _proj_kernel(z_ref, w1_ref, b1_ref, w2_ref, b2_ref, wqk_ref, bqk_ref,
                 qk_ref):
    """Row-wise: Linear -> ReLU -> Linear -> fused (Q|K); one wide store."""
    h = (jnp.dot(z_ref[...], w1_ref[...], preferred_element_type=jnp.float32)
         + b1_ref[...])
    h = jnp.maximum(h, 0.0)
    # TODO(synk): nn.Dropout inside `transform` is identity in eval mode;
    # training-mode dropout is not implemented.
    zt = (jnp.dot(h.astype(jnp.bfloat16), w2_ref[...],
                  preferred_element_type=jnp.float32) + b2_ref[...])
    qk = (jnp.dot(zt.astype(jnp.bfloat16), wqk_ref[...],
                  preferred_element_type=jnp.float32) + bqk_ref[...])
    qk_ref[...] = qk.astype(qk_ref.dtype)


def _attn_kernel(q_ref, k_ref, out_ref):
    """softmax(Q K^T) for one (batch, query-tile); 1/scale already in Q."""
    # dot_general contracts K's minor (H) dim directly -> no explicit k.T.
    s = lax.dot_general(q_ref[...], k_ref[...],
                        dimension_numbers=(((1,), (1,)), ((), ())),
                        preferred_element_type=jnp.float32)          # (TQ, N)
    s = jnp.exp(s - jnp.max(s, axis=-1, keepdims=True))              # reuse s
    # Exact reciprocal (EUP slot is not the bottleneck); keeps row sums at 1.
    out_ref[...] = (s * pl.reciprocal(jnp.sum(s, axis=-1, keepdims=True))
                    ).astype(out_ref.dtype)
    # TODO(synk): the module's final attention dropout is identity in eval mode.
    # TODO(synk): for very large N (>~4096) switch to a K-tiled online-softmax
    # (flash) inner loop to bound the (TQ, N) working set on v7x.


def _device_vmem_caps():
    """(vmem_limit_bytes, TM cap, TQ cap) per device generation."""
    try:
        kind = jax.devices()[0].device_kind.lower()
    except Exception:  # pragma: no cover
        kind = ""
    if ("v5" in kind) or ("v6" in kind):
        # 128 MiB physical VMEM: raise the scoped limit and grow the tiles.
        return 96 * 1024 * 1024, 1024, 512
    # v7x (64 MiB VMEM, 2 TensorCores) and unknown parts: stay conservative.
    return 40 * 1024 * 1024, 512, 256


def _pick_tile(total, cap):
    """Tile <= cap; if everything fits in one block, split in two (multiple of
    8) so both v7x TensorCores get work along the parallel grid axis."""
    if total > cap:
        return cap
    if total >= 16 and total % 16 == 0:
        return total // 2
    return total


def improved_diffusivity_transform(Z, params, *, num_heads=4,
                                   out_dtype=jnp.float32):
    """Z: (B, N, H) float32. Returns attn: (B, N, N) `out_dtype` (eval mode)."""
    B, N, H = Z.shape
    head_dim = H // num_heads
    inv_scale = 1.0 / math.sqrt(head_dim)

    w1, b1, w2, b2, wq, bq, wk, bk = params

    # Fold 1/scale into the Q projection; fuse Q/K into one (H, 2H) matmul.
    wqk = jnp.concatenate([wq * inv_scale, wk], axis=1).astype(jnp.bfloat16)
    bqk = jnp.concatenate([bq * inv_scale, bk], axis=1).astype(jnp.float32)
    w1b = w1.astype(jnp.bfloat16)
    w2b = w2.astype(jnp.bfloat16)

    vmem_limit, tm_cap, tq_cap = _device_vmem_caps()

    # ---- Stage 1: fused linears over all B*N rows (big-M matmuls). ----
    M = B * N
    z2 = Z.reshape(M, H).astype(jnp.bfloat16)   # halve streamed HBM bytes
    TM = _pick_tile(M, tm_cap)

    def _const(shape):
        # Constant index_map -> DMA'd once; single-buffer to save VMEM.
        return pl.BlockSpec(shape, lambda i: (0,) * len(shape),
                            pipeline_mode=pl.Buffered(1))

    qk_flat = pl.pallas_call(
        _proj_kernel,
        out_shape=jax.ShapeDtypeStruct((M, 2 * H), jnp.bfloat16),
        grid_spec=pltpu.PrefetchScalarGridSpec(
            num_scalar_prefetch=0,
            grid=(pl.cdiv(M, TM),),
            in_specs=[
                pl.BlockSpec((TM, H), lambda i: (i, 0)),          # Z rows
                _const((H, H)), _const((1, H)),                   # transform L1
                _const((H, H)), _const((1, H)),                   # transform L2
                _const((H, 2 * H)), _const((1, 2 * H)),           # fused Q|K
            ],
            out_specs=pl.BlockSpec((TM, 2 * H), lambda i: (i, 0)),
        ),
        compiler_params=pltpu.CompilerParams(
            dimension_semantics=("parallel",),
            vmem_limit_bytes=vmem_limit),
    )(z2, w1b, b1, w2b, b2, wqk, bqk)

    # ---- Stage 2: batched Q K^T + softmax, tiled over the query dim. ----
    qk3 = qk_flat.reshape(B, N, 2 * H)           # free metadata reshape
    TQ = _pick_tile(N, tq_cap) if B == 1 else min(N, tq_cap)

    if H % 128 == 0:
        # Zero-copy: Q half = column block 0, K half = column block 1 of the
        # same fused slab.  K is resident per batch; single-buffer it to bound
        # the VMEM footprint (matters on v7x's 64 MiB).
        q_in, k_in = qk3, qk3
        q_spec = pl.BlockSpec((None, TQ, H), lambda b, qi: (b, qi, 0))
        k_spec = pl.BlockSpec((None, N, H), lambda b, qi: (b, 0, 1),
                              pipeline_mode=pl.Buffered(1))
    else:
        # Lane-unaligned H: one small XLA slice per half in the wrapper keeps
        # the attention kernel's blocks full-width / lane-dense.
        q_in = qk3[:, :, :H]
        k_in = qk3[:, :, H:]
        q_spec = pl.BlockSpec((None, TQ, H), lambda b, qi: (b, qi, 0))
        k_spec = pl.BlockSpec((None, N, H), lambda b, qi: (b, 0, 0),
                              pipeline_mode=pl.Buffered(1))

    attn = pl.pallas_call(
        _attn_kernel,
        out_shape=jax.ShapeDtypeStruct((B, N, N), out_dtype),
        grid_spec=pltpu.PrefetchScalarGridSpec(
            num_scalar_prefetch=0,
            grid=(B, pl.cdiv(N, TQ)),
            in_specs=[q_spec, k_spec],
            out_specs=pl.BlockSpec((None, TQ, N), lambda b, qi: (b, qi, 0)),
        ),
        compiler_params=pltpu.CompilerParams(
            dimension_semantics=("parallel", "parallel"),
            vmem_limit_bytes=vmem_limit),
    )(q_in, k_in)
    return attn


def init_params(key, hidden_dim):
    """Mimics nn.Linear init: uniform(-1/sqrt(in), 1/sqrt(in)); weights (in, out)."""
    bound = 1.0 / math.sqrt(hidden_dim)
    keys = jax.random.split(key, 8)

    def w(k):
        return jax.random.uniform(k, (hidden_dim, hidden_dim), jnp.float32,
                                  minval=-bound, maxval=bound)

    def b(k):
        return jax.random.uniform(k, (1, hidden_dim), jnp.float32,
                                  minval=-bound, maxval=bound)

    return (w(keys[0]), b(keys[1]),   # transform[0]
            w(keys[2]), b(keys[3]),   # transform[3]
            w(keys[4]), b(keys[5]),   # proj_q
            w(keys[6]), b(keys[7]))   # proj_k


if __name__ == "__main__":
    B, N, H = 2, 8, 128     # H multiple of 128 -> exercises the fused zero-copy path
    num_heads = 4

    key = jax.random.PRNGKey(0)
    k_z, k_p = jax.random.split(key)
    Z = jax.random.normal(k_z, (B, N, H), jnp.float32)
    params = init_params(k_p, H)

    attn = improved_diffusivity_transform(Z, params, num_heads=num_heads)
    attn = jax.block_until_ready(attn)

    # Pure-JAX f32 reference (eval mode: both dropouts are identity).
    w1, b1, w2, b2, wq, bq, wk, bk = params
    zt = jnp.maximum(Z @ w1 + b1, 0.0) @ w2 + b2
    q = zt @ wq + bq
    k = zt @ wk + bk
    s = jnp.einsum("bnh,bmh->bnm", q, k) / math.sqrt(H // num_heads)
    ref = jax.nn.softmax(s, axis=-1)

    assert attn.shape == (B, N, N)
    assert bool(jnp.allclose(jnp.sum(attn, axis=-1), 1.0, atol=1e-4))
    assert bool(jnp.allclose(attn, ref, atol=2e-2))
    print("KERNEL_OK")
</pallas_src>

<mosaic_0001>
module attributes {stable_mosaic.version = 11 : i64} {
  func.func @_proj_kernel(%arg0: i32, %arg1: memref<8x128xbf16, #tpu.memory_space<vmem>>, %arg2: memref<128x128xbf16, #tpu.memory_space<vmem>>, %arg3: memref<1x128xf32, #tpu.memory_space<vmem>>, %arg4: memref<128x128xbf16, #tpu.memory_space<vmem>>, %arg5: memref<1x128xf32, #tpu.memory_space<vmem>>, %arg6: memref<128x256xbf16, #tpu.memory_space<vmem>>, %arg7: memref<1x256xf32, #tpu.memory_space<vmem>>, %arg8: memref<8x256xbf16, #tpu.memory_space<vmem>>) attributes {dimension_semantics = [#tpu.dimension_semantics<parallel>], iteration_bounds = array<i64: 2>, scalar_prefetch = 0 : i64, scratch_operands = 0 : i64, tpu.core_type = #tpu.core_type<tc>, window_params = [{transform_indices = @transform_0, window_bounds = array<i64: 8, 128>}, {pipeline_mode = #tpu.pipeline_mode<synchronous>, transform_indices = @transform_1, window_bounds = array<i64: 128, 128>}, {pipeline_mode = #tpu.pipeline_mode<synchronous>, transform_indices = @transform_2, window_bounds = array<i64: 1, 128>}, {pipeline_mode = #tpu.pipeline_mode<synchronous>, transform_indices = @transform_3, window_bounds = array<i64: 128, 128>}, {pipeline_mode = #tpu.pipeline_mode<synchronous>, transform_indices = @transform_4, window_bounds = array<i64: 1, 128>}, {pipeline_mode = #tpu.pipeline_mode<synchronous>, transform_indices = @transform_5, window_bounds = array<i64: 128, 256>}, {pipeline_mode = #tpu.pipeline_mode<synchronous>, transform_indices = @transform_6, window_bounds = array<i64: 1, 256>}, {transform_indices = @transform_7, window_bounds = array<i64: 8, 256>}]} {
    %c0 = arith.constant 0 : index
    %c0_0 = arith.constant 0 : index
    %0 = vector.load %arg1[%c0, %c0_0] : memref<8x128xbf16, #tpu.memory_space<vmem>>, vector<8x128xbf16>
    %c0_1 = arith.constant 0 : index
    %c0_2 = arith.constant 0 : index
    %1 = vector.load %arg2[%c0_1, %c0_2] : memref<128x128xbf16, #tpu.memory_space<vmem>>, vector<128x128xbf16>
    %cst = arith.constant dense<0.000000e+00> : vector<8x128xf32>
    %2 = tpu.matmul %0, %1, %cst {dimension_numbers = #tpu.dot_dimension_numbers<[1], [0], [0], [1], [0, 0, 1, 1], [], []>} : vector<8x128xbf16>, vector<128x128xbf16>, vector<8x128xf32> -> vector<8x128xf32>
    %c0_3 = arith.constant 0 : index
    %c0_4 = arith.constant 0 : index
    %3 = vector.load %arg3[%c0_3, %c0_4] : memref<1x128xf32, #tpu.memory_space<vmem>>, vector<1x128xf32>
    %4 = vector.broadcast %3 : vector<1x128xf32> to vector<8x128xf32>
    %5 = arith.addf %2, %4 : vector<8x128xf32>
    %cst_5 = arith.constant 0.000000e+00 : f32
    %6 = vector.broadcast %cst_5 : f32 to vector<8x128xf32>
    %7 = arith.maximumf %5, %6 : vector<8x128xf32>
    %8 = arith.truncf %7 : vector<8x128xf32> to vector<8x128xbf16>
    %c0_6 = arith.constant 0 : index
    %c0_7 = arith.constant 0 : index
    %9 = vector.load %arg4[%c0_6, %c0_7] : memref<128x128xbf16, #tpu.memory_space<vmem>>, vector<128x128xbf16>
    %cst_8 = arith.constant dense<0.000000e+00> : vector<8x128xf32>
    %10 = tpu.matmul %8, %9, %cst_8 {dimension_numbers = #tpu.dot_dimension_numbers<[1], [0], [0], [1], [0, 0, 1, 1], [], []>} : vector<8x128xbf16>, vector<128x128xbf16>, vector<8x128xf32> -> vector<8x128xf32>
    %c0_9 = arith.constant 0 : index
    %c0_10 = arith.constant 0 : index
    %11 = vector.load %arg5[%c0_9, %c0_10] : memref<1x128xf32, #tpu.memory_space<vmem>>, vector<1x128xf32>
    %12 = vector.broadcast %11 : vector<1x128xf32> to vector<8x128xf32>
    %13 = arith.addf %10, %12 : vector<8x128xf32>
    %14 = arith.truncf %13 : vector<8x128xf32> to vector<8x128xbf16>
    %c0_11 = arith.constant 0 : index
    %c0_12 = arith.constant 0 : index
    %15 = vector.load %arg6[%c0_11, %c0_12] : memref<128x256xbf16, #tpu.memory_space<vmem>>, vector<128x256xbf16>
    %cst_13 = arith.constant dense<0.000000e+00> : vector<8x256xf32>
    %16 = tpu.matmul %14, %15, %cst_13 {dimension_numbers = #tpu.dot_dimension_numbers<[1], [0], [0], [1], [0, 0, 1, 1], [], []>} : vector<8x128xbf16>, vector<128x256xbf16>, vector<8x256xf32> -> vector<8x256xf32>
    %c0_14 = arith.constant 0 : index
    %c0_15 = arith.constant 0 : index
    %17 = vector.load %arg7[%c0_14, %c0_15] : memref<1x256xf32, #tpu.memory_space<vmem>>, vector<1x256xf32>
    %18 = vector.broadcast %17 : vector<1x256xf32> to vector<8x256xf32>
    %19 = arith.addf %16, %18 : vector<8x256xf32>
    %20 = arith.truncf %19 : vector<8x256xf32> to vector<8x256xbf16>
    %c0_16 = arith.constant 0 : index
    %c0_17 = arith.constant 0 : index
    %21 = vector.load %arg8[%c0_16, %c0_17] : memref<8x256xbf16, #tpu.memory_space<vmem>>, vector<8x256xbf16>
    tpu.vector_store %arg8[%c0_16, %c0_17], %20 {strides = array<i32>} : memref<8x256xbf16, #tpu.memory_space<vmem>>, vector<8x256xbf16>,
    return
  }
  func.func @transform_0(%arg0: i32) -> (i32, i32) {
    %c0_i32 = arith.constant 0 : i32
    %c0_i32_0 = arith.constant 0 : i32
    return %arg0, %c0_i32 : i32, i32
  }
  func.func @transform_1(%arg0: i32) -> (i32, i32) {
    %c0_i32 = arith.constant 0 : i32
    %c0_i32_0 = arith.constant 0 : i32
    %c0_i32_1 = arith.constant 0 : i32
    return %c0_i32, %c0_i32_0 : i32, i32
  }
  func.func @transform_2(%arg0: i32) -> (i32, i32) {
    %c0_i32 = arith.constant 0 : i32
    %c0_i32_0 = arith.constant 0 : i32
    %c0_i32_1 = arith.constant 0 : i32
    return %c0_i32, %c0_i32_0 : i32, i32
  }
  func.func @transform_3(%arg0: i32) -> (i32, i32) {
    %c0_i32 = arith.constant 0 : i32
    %c0_i32_0 = arith.constant 0 : i32
    %c0_i32_1 = arith.constant 0 : i32
    return %c0_i32, %c0_i32_0 : i32, i32
  }
  func.func @transform_4(%arg0: i32) -> (i32, i32) {
    %c0_i32 = arith.constant 0 : i32
    %c0_i32_0 = arith.constant 0 : i32
    %c0_i32_1 = arith.constant 0 : i32
    return %c0_i32, %c0_i32_0 : i32, i32
  }
  func.func @transform_5(%arg0: i32) -> (i32, i32) {
    %c0_i32 = arith.constant 0 : i32
    %c0_i32_0 = arith.constant 0 : i32
    %c0_i32_1 = arith.constant 0 : i32
    return %c0_i32, %c0_i32_0 : i32, i32
  }
  func.func @transform_6(%arg0: i32) -> (i32, i32) {
    %c0_i32 = arith.constant 0 : i32
    %c0_i32_0 = arith.constant 0 : i32
    %c0_i32_1 = arith.constant 0 : i32
    return %c0_i32, %c0_i32_0 : i32, i32
  }
  func.func @transform_7(%arg0: i32) -> (i32, i32) {
    %c0_i32 = arith.constant 0 : i32
    %c0_i32_0 = arith.constant 0 : i32
    return %arg0, %c0_i32 : i32, i32
  }
}

</mosaic_0001>

<llo_original>
// kernel: tpu_custom_call.1
$region0: #{tpu_custom_call.1}
  #allocation0 [shape = 'u32[]', space=smem, size = 0x4, offset = 0x4, fixed_abs, tag = 'smem constant byte address 0x4 - core index']
  #allocation1 [shape = 'u32[144,128]{1,0:T(1,128)}', space=vmem, size = 0x12000, scoped, tag = 'internal scratch']
  %s0 = inlined_call_operand.hbm [shape: bf16[16,128], index: 0, kind: input, shape index: {}]
  %s1 = inlined_call_operand.hbm [shape: bf16[128,128], index: 1, kind: input, shape index: {}]
  %s2 = inlined_call_operand.vmem [shape: f32[1,128], index: 2, kind: input, shape index: {}]
  %s3 = inlined_call_operand.hbm [shape: bf16[128,128], index: 3, kind: input, shape index: {}]
  %s4 = inlined_call_operand.vmem [shape: f32[1,128], index: 4, kind: input, shape index: {}]
  %s5 = inlined_call_operand.hbm [shape: bf16[128,256], index: 5, kind: input, shape index: {}]
  %s6 = inlined_call_operand.vmem [shape: f32[1,256], index: 6, kind: input, shape index: {}]
  %s7 = inlined_call_operand.hbm [shape: bf16[16,256], index: 7, kind: output, shape index: {}]
  %s8 = sld [smem:[#allocation0]]
  $region77: #{tpu_custom_call.1} parent=0
    _
  %s10 = ssub.s32 1, %s8
  %s11 = scalar_select 0, %s10, %s8
  $region1: #{tpu_custom_call.1} parent=0
    #allocation2 [shape = 'u8[4096]{0}', space=vmem, size = 0x1000, scoped, tag = 'input window, operand 0']
    #allocation3 [shape = 's32[2]{0}', space=sflag, size = 0x8, scoped, tag = 'scoped memory for tpu_custom_call.1']
    #allocation4 [shape = 's32[2]{0}', space=sflag, size = 0x8, scoped, tag = 'scoped memory for tpu_custom_call.1']
    #allocation5 [shape = 'u8[32768]{0}', space=vmem, size = 0x8000, scoped, tag = 'input window, operand 1, single buffered']
    #allocation6 [shape = 's32[1]{0}', space=sflag, size = 0x4, scoped, tag = 'scoped memory for tpu_custom_call.1']
    #allocation7 [shape = 'u8[32768]{0}', space=vmem, size = 0x8000, scoped, tag = 'input window, operand 3, single buffered']
    #allocation8 [shape = 'u8[65536]{0}', space=vmem, size = 0x10000, scoped, tag = 'input window, operand 5, single buffered']
    #allocation9 [shape = 's32[1]{0}', space=sflag, size = 0x4, scoped, tag = 'scoped memory for tpu_custom_call.1']
    #allocation10 [shape = 'u8[8192]{0}', space=vmem, size = 0x2000, scoped, tag = 'output window, operand 0']
    %12 = vsyncpa [#allocation3], 0
    %s13 = scalar_lea.sflag [#allocation3], 1
    %14 = vsyncpa %s13, 0
    %15 = vsyncpa [#allocation6], 0
    %16 = vsyncpa [#allocation9], 0
    %17 = vsyncpa [#allocation4], 0
    %s18 = scalar_lea.sflag [#allocation4], 1
    %19 = vsyncpa %s18, 0
    loop: start=0, step=1, limit=4
    $region2: #{tpu_custom_call.1} parent=1 // loop_pre_header
      _
    $region3: #{tpu_custom_call.1} parent=1 // loop_header
      %s21 = sphi 0, %s25
      %p22 = scmp.ge.s32.totalorder %s21, 4
      %s31 = sphi 0, %s33
      %s34 = sphi 0, %s31
      %s35 = sphi 0, %s34
      %s51 = sphi 0, %s35
      %s55 = sphi 0, %s55
      %s57 = sphi 0, %s55
      %s58 = sphi 0, %s57
      %s72 = sphi 0, %s58
      %s76 = sphi 0, %s76
      %s78 = sphi 0, %s76
      %s79 = sphi 0, %s78
      %s93 = sphi 0, %s79
      %s97 = sphi 0, %s97
      %s99 = sphi 0, %s97
      %s100 = sphi 0, %s99
      %s114 = sphi 0, %s100
      %s118 = sphi 0, %s118
      %s120 = sphi 0, %s118
      %s121 = sphi 0, %s120
      %s135 = sphi 0, %s121
      %s139 = sphi 0, %s139
      %s141 = sphi 0, %s139
      %s142 = sphi 0, %s141
      %s156 = sphi 0, %s142
      %s160 = sphi 0, %s160
      %s162 = sphi 0, %s160
      %s163 = sphi 0, %s162
      %s177 = sphi 0, %s163
      %s183 = sphi 0, %s185
      %s186 = sphi 0, %s183
      %s187 = sphi 0, %s186
      %s203 = sphi 0, %s187
    $region4: #{tpu_custom_call.1} parent=1 // loop_header_branch
      %24 = sbr.rel (%p22) target = $region8
    $region5: #{tpu_custom_call.1} parent=1 // loop_body
      %s26 = ssub.s32 %s21, 1
      %s27 = ssub.s32 %s21, 2
      %s28 = sadd.s32 %s21, 1
      %s29 = ssub.s32 %s21, %s28
      %p30 = scmp.eq.s32.totalorder %s29, 0
      %s32 = sadd.s32 %s31, 1
      %s33 = scalar_select %p30, %s31, %s32
      %p36 = pneg %p30
      %p37 = scmp.eq.s32.totalorder %s21, 1
      %p38 = por %p36, %p37
      %p39 = scmp.ne.s32.totalorder %s31, %s34
      %p40 = scmp.eq.s32.totalorder %s21, 0
      %p41 = por %p39, %p40
      %p42 = scmp.ne.s32.totalorder %s31, %s34
      %p43 = scmp.eq.s32.totalorder %s26, 1
      %p44 = por %p42, %p43
      %p45 = scmp.ne.s32.totalorder %s34, %s35
      %p46 = scmp.eq.s32.totalorder %s26, 0
      %p47 = por %p45, %p46
      %p48 = scmp.ne.s32.totalorder %s34, %s35
      %p49 = scmp.eq.s32.totalorder %s27, 1
      %p50 = por %p48, %p49
      %p52 = scmp.ne.s32.totalorder %s35, %s51
      %p53 = scmp.eq.s32.totalorder %s27, 0
      %p54 = por %p52, %p53
      %s56 = sadd.s32 %s55, 1
      %p59 = scmp.eq.s32.totalorder %s21, 1
      %p60 = scmp.ne.s32.totalorder %s55, %s57
      %p61 = scmp.eq.s32.totalorder %s21, 0
      %p62 = por %p60, %p61
      %p63 = scmp.ne.s32.totalorder %s55, %s57
      %p64 = scmp.eq.s32.totalorder %s26, 1
      %p65 = por %p63, %p64
      %p66 = scmp.ne.s32.totalorder %s57, %s58
      %p67 = scmp.eq.s32.totalorder %s26, 0
      %p68 = por %p66, %p67
      %p69 = scmp.ne.s32.totalorder %s57, %s58
      %p70 = scmp.eq.s32.totalorder %s27, 1
      %p71 = por %p69, %p70
      %p73 = scmp.ne.s32.totalorder %s58, %s72
      %p74 = scmp.eq.s32.totalorder %s27, 0
      %p75 = por %p73, %p74
      %s77 = sadd.s32 %s76, 1
      %p80 = scmp.eq.s32.totalorder %s21, 1
      %p81 = scmp.ne.s32.totalorder %s76, %s78
      %p82 = scmp.eq.s32.totalorder %s21, 0
      %p83 = por %p81, %p82
      %p84 = scmp.ne.s32.totalorder %s76, %s78
      %p85 = scmp.eq.s32.totalorder %s26, 1
      %p86 = por %p84, %p85
      %p87 = scmp.ne.s32.totalorder %s78, %s79
      %p88 = scmp.eq.s32.totalorder %s26, 0
      %p89 = por %p87, %p88
      %p90 = scmp.ne.s32.totalorder %s78, %s79
      %p91 = scmp.eq.s32.totalorder %s27, 1
      %p92 = por %p90, %p91
      %p94 = scmp.ne.s32.totalorder %s79, %s93
      %p95 = scmp.eq.s32.totalorder %s27, 0
      %p96 = por %p94, %p95
      %s98 = sadd.s32 %s97, 1
      %p101 = scmp.eq.s32.totalorder %s21, 1
      %p102 = scmp.ne.s32.totalorder %s97, %s99
      %p103 = scmp.eq.s32.totalorder %s21, 0
      %p104 = por %p102, %p103
      %p105 = scmp.ne.s32.totalorder %s97, %s99
      %p106 = scmp.eq.s32.totalorder %s26, 1
      %p107 = por %p105, %p106
      %p108 = scmp.ne.s32.totalorder %s99, %s100
      %p109 = scmp.eq.s32.totalorder %s26, 0
      %p110 = por %p108, %p109
      %p111 = scmp.ne.s32.totalorder %s99, %s100
      %p112 = scmp.eq.s32.totalorder %s27, 1
      %p113 = por %p111, %p112
      %p115 = scmp.ne.s32.totalorder %s100, %s114
      %p116 = scmp.eq.s32.totalorder %s27, 0
      %p117 = por %p115, %p116
      %s119 = sadd.s32 %s118, 1
      %p122 = scmp.eq.s32.totalorder %s21, 1
      %p123 = scmp.ne.s32.totalorder %s118, %s120
      %p124 = scmp.eq.s32.totalorder %s21, 0
      %p125 = por %p123, %p124
      %p126 = scmp.ne.s32.totalorder %s118, %s120
      %p127 = scmp.eq.s32.totalorder %s26, 1
      %p128 = por %p126, %p127
      %p129 = scmp.ne.s32.totalorder %s120, %s121
      %p130 = scmp.eq.s32.totalorder %s26, 0
      %p131 = por %p129, %p130
      %p132 = scmp.ne.s32.totalorder %s120, %s121
      %p133 = scmp.eq.s32.totalorder %s27, 1
      %p134 = por %p132, %p133
      %p136 = scmp.ne.s32.totalorder %s121, %s135
      %p137 = scmp.eq.s32.totalorder %s27, 0
      %p138 = por %p136, %p137
      %s140 = sadd.s32 %s139, 1
      %p143 = scmp.eq.s32.totalorder %s21, 1
      %p144 = scmp.ne.s32.totalorder %s139, %s141
      %p145 = scmp.eq.s32.totalorder %s21, 0
      %p146 = por %p144, %p145
      %p147 = scmp.ne.s32.totalorder %s139, %s141
      %p148 = scmp.eq.s32.totalorder %s26, 1
      %p149 = por %p147, %p148
      %p150 = scmp.ne.s32.totalorder %s141, %s142
      %p151 = scmp.eq.s32.totalorder %s26, 0
      %p152 = por %p150, %p151
      %p153 = scmp.ne.s32.totalorder %s141, %s142
      %p154 = scmp.eq.s32.totalorder %s27, 1
      %p155 = por %p153, %p154
      %p157 = scmp.ne.s32.totalorder %s142, %s156
      %p158 = scmp.eq.s32.totalorder %s27, 0
      %p159 = por %p157, %p158
      %s161 = sadd.s32 %s160, 1
      %p164 = scmp.eq.s32.totalorder %s21, 1
      %p165 = scmp.ne.s32.totalorder %s160, %s162
      %p166 = scmp.eq.s32.totalorder %s21, 0
      %p167 = por %p165, %p166
      %p168 = scmp.ne.s32.totalorder %s160, %s162
      %p169 = scmp.eq.s32.totalorder %s26, 1
      %p170 = por %p168, %p169
      %p171 = scmp.ne.s32.totalorder %s162, %s163
      %p172 = scmp.eq.s32.totalorder %s26, 0
      %p173 = por %p171, %p172
      %p174 = scmp.ne.s32.totalorder %s162, %s163
      %p175 = scmp.eq.s32.totalorder %s27, 1
      %p176 = por %p174, %p175
      %p178 = scmp.ne.s32.totalorder %s163, %s177
      %p179 = scmp.eq.s32.totalorder %s27, 0
      %p180 = por %p178, %p179
      %s181 = ssub.s32 %s21, %s28
      %p182 = scmp.eq.s32.totalorder %s181, 0
      %s184 = sadd.s32 %s183, 1
      %s185 = scalar_select %p182, %s183, %s184
      %p188 = pneg %p182
      %p189 = scmp.eq.s32.totalorder %s21, 1
      %p190 = por %p188, %p189
      %p191 = scmp.ne.s32.totalorder %s183, %s186
      %p192 = scmp.eq.s32.totalorder %s21, 0
      %p193 = por %p191, %p192
      %p194 = scmp.ne.s32.totalorder %s183, %s186
      %p195 = scmp.eq.s32.totalorder %s26, 1
      %p196 = por %p194, %p195
      %p197 = scmp.ne.s32.totalorder %s186, %s187
      %p198 = scmp.eq.s32.totalorder %s26, 0
      %p199 = por %p197, %p198
      %p200 = scmp.ne.s32.totalorder %s186, %s187
      %p201 = scmp.eq.s32.totalorder %s27, 1
      %p202 = por %p200, %p201
      %p204 = scmp.ne.s32.totalorder %s187, %s203
      %p205 = scmp.eq.s32.totalorder %s27, 0
      %p206 = por %p204, %p205
      %p207 = scmp.le.s32.totalorder 1, %s21
      %p208 = scmp.lt.s32.totalorder %s21, 3
      %p209 = pnand %p207, %p208
      %p210 = pneg %p209
      // Predicated region
      $region9: #{tpu_custom_call.1} parent=5 // pred_check
        _
      $region10: #{tpu_custom_call.1} parent=5 // pred_check_branch
        %212 = sbr.rel (%p209) target = $region12
      $region11: #{tpu_custom_call.1} parent=5 // pred_region
        %s213 = ssub.s32 %s21, 1
        // Predicated region
        $region13: #{tpu_custom_call.1} parent=11 // pred_check
          %p214 = pneg %p68
        $region14: #{tpu_custom_call.1} parent=11 // pred_check_branch
          %216 = sbr.rel (%p214) target = $region16
        $region15: #{tpu_custom_call.1} parent=11 // pred_region
          %s218 = ssub.s32 1024, 1024
          %219 = vsyncadd [#allocation6], %s218
          %s220 = sshll.u32 [#allocation5], 4
          %s221 = int_to_ptr.vmem [resolvable:$true] %s220
          %226 = dma.hbm_to_vmem [thread:$0]  %s1, 1024, %s221, [#allocation6], 64, 64, 4
        $region16: #{tpu_custom_call.1} parent=11 // pred_fallthru
          _
        // Predicated region
        $region17: #{tpu_custom_call.1} parent=11 // pred_check
          %p227 = pneg %p89
        $region18: #{tpu_custom_call.1} parent=11 // pred_check_branch
          %229 = sbr.rel (%p227) target = $region20
        $region19: #{tpu_custom_call.1} parent=11 // pred_region
          _
        $region20: #{tpu_custom_call.1} parent=11 // pred_fallthru
          _
        // Predicated region
        $region21: #{tpu_custom_call.1} parent=11 // pred_check
          %p230 = pneg %p110
        $region22: #{tpu_custom_call.1} parent=11 // pred_check_branch
          %232 = sbr.rel (%p230) target = $region24
        $region23: #{tpu_custom_call.1} parent=11 // pred_region
          %s234 = ssub.s32 1024, 1024
          %235 = vsyncadd [#allocation6], %s234
          %s236 = sshll.u32 [#allocation7], 4
          %s237 = int_to_ptr.vmem [resolvable:$true] %s236
          %242 = dma.hbm_to_vmem [thread:$0]  %s3, 1024, %s237, [#allocation6], 64, 64, 4
        $region24: #{tpu_custom_call.1} parent=11 // pred_fallthru
          _
        // Predicated region
        $region25: #{tpu_custom_call.1} parent=11 // pred_check
          %p243 = pneg %p131
        $region26: #{tpu_custom_call.1} parent=11 // pred_check_branch
          %245 = sbr.rel (%p243) target = $region28
        $region27: #{tpu_custom_call.1} parent=11 // pred_region
          _
        $region28: #{tpu_custom_call.1} parent=11 // pred_fallthru
          _
        // Predicated region
        $region29: #{tpu_custom_call.1} parent=11 // pred_check
          %p246 = pneg %p152
        $region30: #{tpu_custom_call.1} parent=11 // pred_check_branch
          %248 = sbr.rel (%p246) target = $region32
        $region31: #{tpu_custom_call.1} parent=11 // pred_region
          %s250 = ssub.s32 2048, 2048
          %251 = vsyncadd [#allocation9], %s250
          %s252 = sshll.u32 [#allocation8], 4
          %s253 = int_to_ptr.vmem [resolvable:$true] %s252
          %258 = dma.hbm_to_vmem [thread:$0]  %s5, 2048, %s253, [#allocation9], 128, 128, 8
        $region32: #{tpu_custom_call.1} parent=11 // pred_fallthru
          _
        // Predicated region
        $region33: #{tpu_custom_call.1} parent=11 // pred_check
          %p259 = pneg %p173
        $region34: #{tpu_custom_call.1} parent=11 // pred_check_branch
          %261 = sbr.rel (%p259) target = $region36
        $region35: #{tpu_custom_call.1} parent=11 // pred_region
          _
        $region36: #{tpu_custom_call.1} parent=11 // pred_fallthru
          _
      $region12: #{tpu_custom_call.1} parent=5 // pred_fallthru
        _
      %p262 = scmp.lt.s32.totalorder %s21, 2
      // Predicated region
      $region37: #{tpu_custom_call.1} parent=5 // pred_check
        %p263 = pneg %p262
      $region38: #{tpu_custom_call.1} parent=5 // pred_check_branch
        %265 = sbr.rel (%p263) target = $region40
      $region39: #{tpu_custom_call.1} parent=5 // pred_region
        // Predicated region
        $region41: #{tpu_custom_call.1} parent=39 // pred_check
          %p266 = pneg %p41
        $region42: #{tpu_custom_call.1} parent=39 // pred_check_branch
          %268 = sbr.rel (%p266) target = $region44
        $region43: #{tpu_custom_call.1} parent=39 // pred_region
          %s269 = sand.u32 %s31, 1
          %s270 = scalar_lea.sflag [#allocation3], %s269
          %s271 = sand.u32 %s31, 1
          %s272 = smul.addr %s271, 4
          %s273 = scalar_lea.vmem [#allocation2], %s272
          %s275 = ssub.s32 64, 64
          %276 = vsyncadd %s270, %s275
          %s277 = smul.addr %s21, 64
          %s278 = scalar_lea.hbm %s0, %s277
          %s280 = sshll.u32 %s273, 4
          %s281 = int_to_ptr.vmem [resolvable:$true] %s280
          %283 = dma.hbm_to_vmem [thread:$0]  %s278, 64, %s281, %s270
        $region44: #{tpu_custom_call.1} parent=39 // pred_fallthru
          _
      $region40: #{tpu_custom_call.1} parent=5 // pred_fallthru
        _
      %p284 = scmp.le.s32.totalorder 1, %s21
      %p285 = scmp.lt.s32.totalorder %s21, 3
      %p286 = pnand %p284, %p285
      %p287 = pneg %p286
      // Predicated region
      $region45: #{tpu_custom_call.1} parent=5 // pred_check
        _
      $region46: #{tpu_custom_call.1} parent=5 // pred_check_branch
        %289 = sbr.rel (%p286) target = $region48
      $region47: #{tpu_custom_call.1} parent=5 // pred_region
        %s290 = ssub.s32 %s21, 1
        %s291 = sand.u32 %s34, 1
        %s292 = scalar_lea.sflag [#allocation3], %s291
        %s293 = sand.u32 %s34, 1
        %s294 = smul.addr %s293, 4
        %s295 = scalar_lea.vmem [#allocation2], %s294
        // Predicated region
        $region49: #{tpu_custom_call.1} parent=47 // pred_check
          %p296 = pneg %p47
        $region50: #{tpu_custom_call.1} parent=47 // pred_check_branch
          %298 = sbr.rel (%p296) target = $region52
        $region51: #{tpu_custom_call.1} parent=47 // pred_region
          %299 = dma.done %s292, 64
        $region52: #{tpu_custom_call.1} parent=47 // pred_fallthru
          _
        // Predicated region
        $region53: #{tpu_custom_call.1} parent=47 // pred_check
          %p300 = pneg %p68
        $region54: #{tpu_custom_call.1} parent=47 // pred_check_branch
          %302 = sbr.rel (%p300) target = $region56
        $region55: #{tpu_custom_call.1} parent=47 // pred_region
          %303 = dma.done [#allocation6], 1024
        $region56: #{tpu_custom_call.1} parent=47 // pred_fallthru
          _
        // Predicated region
        $region57: #{tpu_custom_call.1} parent=47 // pred_check
          %p304 = pneg %p110
        $region58: #{tpu_custom_call.1} parent=47 // pred_check_branch
          %306 = sbr.rel (%p304) target = $region60
        $region59: #{tpu_custom_call.1} parent=47 // pred_region
          %307 = dma.done [#allocation6], 1024
        $region60: #{tpu_custom_call.1} parent=47 // pred_fallthru
          _
        // Predicated region
        $region61: #{tpu_custom_call.1} parent=47 // pred_check
          %p308 = pneg %p152
        $region62: #{tpu_custom_call.1} parent=47 // pred_check_branch
          %310 = sbr.rel (%p308) target = $region64
        $region63: #{tpu_custom_call.1} parent=47 // pred_region
          %311 = dma.done [#allocation9], 2048
        $region64: #{tpu_custom_call.1} parent=47 // pred_fallthru
          _
        %s312 = sand.u32 %s34, 1
        %s313 = scalar_lea.sflag [#allocation3], %s312
        %s314 = sand.u32 %s34, 1
        %s315 = smul.addr %s314, 4
        %s316 = scalar_lea.vmem [#allocation2], %s315
        %p317 = pneg %p47
        %p318 = pneg %p44
        %p319 = pneg %p68
        %p320 = pneg %p65
        %p321 = pneg %p89
        %p322 = pneg %p86
        %p323 = pneg %p110
        %p324 = pneg %p107
        %p325 = pneg %p131
        %p326 = pneg %p128
        %p327 = pneg %p152
        %p328 = pneg %p149
        %p329 = pneg %p173
        %p330 = pneg %p170
        %p331 = pneg %p199
        %p332 = pneg %p196
        %s333 = sand.u32 %s186, 1
        %s334 = scalar_lea.sflag [#allocation4], %s333
        %s335 = sand.u32 %s186, 1
        %s336 = smul.addr %s335, 8
        %s337 = scalar_lea.vmem [#allocation10], %s336
        %v339 = vld [vmem:[%s295] sm:$0xf]
        %v340 = vld [vmem:[#allocation5] sm:$0xf]
        %v341 = vld [vmem:[#allocation5 + $0x4] sm:$0xf]
        %v342 = vld [vmem:[#allocation5 + $0x8] sm:$0xf]
        %v343 = vld [vmem:[#allocation5 + $0xc] sm:$0xf]
        %v344 = vld [vmem:[#allocation5 + $0x10] sm:$0xf]
        %v345 = vld [vmem:[#allocation5 + $0x14] sm:$0xf]
        %v346 = vld [vmem:[#allocation5 + $0x18] sm:$0xf]
        %v347 = vld [vmem:[#allocation5 + $0x1c] sm:$0xf]
        %v348 = vld [vmem:[#allocation5 + $0x20] sm:$0xf]
        %v349 = vld [vmem:[#allocation5 + $0x24] sm:$0xf]
        %v350 = vld [vmem:[#allocation5 + $0x28] sm:$0xf]
        %v351 = vld [vmem:[#allocation5 + $0x2c] sm:$0xf]
        %v352 = vld [vmem:[#allocation5 + $0x30] sm:$0xf]
        %v353 = vld [vmem:[#allocation5 + $0x34] sm:$0xf]
        %v354 = vld [vmem:[#allocation5 + $0x38] sm:$0xf]
        %v355 = vld [vmem:[#allocation5 + $0x3c] sm:$0xf]
        %v356 = vld [vmem:[%s2] sm:$0x1]
        %v358 = vlaneseq
        %v359 = vshrl.u32 %v358, 7
        %v360 = vsub.s32 0, %v359
        %v361 = vrot.slane %v356, %v360
        %v379 = vunpack.c.l.b16 %v340
        %v380 = vunpack.c.l.b16 %v341
        %v381 = vunpack.c.l.b16 %v342
        %v382 = vunpack.c.l.b16 %v343
        %v383 = vunpack.c.l.b16 %v344
        %v384 = vunpack.c.l.b16 %v345
        %v385 = vunpack.c.l.b16 %v346
        %v386 = vunpack.c.l.b16 %v347
        %v387 = vunpack.c.l.b16 %v348
        %v388 = vunpack.c.l.b16 %v349
        %v389 = vunpack.c.l.b16 %v350
        %v390 = vunpack.c.l.b16 %v351
        %v391 = vunpack.c.l.b16 %v352
        %v392 = vunpack.c.l.b16 %v353
        %v393 = vunpack.c.l.b16 %v354
        %v394 = vunpack.c.l.b16 %v355
        %v395 = vpack.c.b16 %v380, %v379
        %v396 = vpack.c.b16 %v382, %v381
        %v397 = vpack.c.b16 %v384, %v383
        %v398 = vpack.c.b16 %v386, %v385
        %v399 = vpack.c.b16 %v388, %v387
        %v400 = vpack.c.b16 %v390, %v389
        %v401 = vpack.c.b16 %v392, %v391
        %v402 = vpack.c.b16 %v394, %v393
        %411 = vmatprep.subr.bf16.mxu0 0
        %412 = vmatpush1.bf16.msra.mxu0 %v395
        %413 = vmatprep.subr.bf16.mxu0 0
        %414 = vmatpush1.bf16.msra.mxu0 %v396
        %415 = vmatprep.subr.bf16.mxu0 0
        %416 = vmatpush1.bf16.msra.mxu0 %v397
        %417 = vmatprep.subr.bf16.mxu0 0
        %418 = vmatpush1.bf16.msra.mxu0 %v398
        %419 = vmatprep.subr.bf16.mxu0 0
        %420 = vmatpush1.bf16.msra.mxu0 %v399
        %421 = vmatprep.subr.bf16.mxu0 0
        %422 = vmatpush1.bf16.msra.mxu0 %v400
        %423 = vmatprep.subr.bf16.mxu0 0
        %424 = vmatpush1.bf16.msra.mxu0 %v401
        %425 = vmatprep.subr.bf16.mxu0 0
        %426 = vmatpush1.bf16.msra.mxu0 %v402
        %427 = vmatprep.subr.bf16.mxu0 0
        %428 = vmatpush1.bf16.msra.mxu0 0
        %429 = vmatprep.subr.bf16.mxu0 0
        %430 = vmatpush1.bf16.msra.mxu0 0
        %431 = vmatprep.subr.bf16.mxu0 0
        %432 = vmatpush1.bf16.msra.mxu0 0
        %433 = vmatprep.subr.bf16.mxu0 0
        %434 = vmatpush1.bf16.msra.mxu0 0
        %435 = vmatprep.subr.bf16.mxu0 0
        %436 = vmatpush1.bf16.msra.mxu0 0
        %437 = vmatprep.subr.bf16.mxu0 0
        %438 = vmatpush1.bf16.msra.mxu0 0
        %439 = vmatprep.subr.bf16.mxu0 0
        %440 = vmatpush1.bf16.msra.mxu0 0
        %441 = vmatprep.subr.bf16.mxu0 0
        %442 = vmatpush1.bf16.msra.mxu0 0
        %443 = vmatprep.mubr.bf16.mxu0 0
        %444 = vmatmul.mubr.bf16.gmra.mrb[0].mxu0 %v339
        %v445 = vpop.f32.mrb[0].mxu0
        %v446 = vadd.f32 %v361, %v445
        %v447 = vpop.f32.mrb[0].mxu0
        %v448 = vpop.f32.mrb[0].mxu0
        %v449 = vpop.f32.mrb[0].mxu0
        %450 = vdwg.mxu0
        %v451 = vmax.f32 %v446, 0.0
        %v452 = vpack.c.bf16 %v451, %v451
        %v453 = vld [vmem:[#allocation7] sm:$0xf]
        %v454 = vld [vmem:[#allocation7 + $0x4] sm:$0xf]
        %v455 = vld [vmem:[#allocation7 + $0x8] sm:$0xf]
        %v456 = vld [vmem:[#allocation7 + $0xc] sm:$0xf]
        %v457 = vld [vmem:[#allocation7 + $0x10] sm:$0xf]
        %v458 = vld [vmem:[#allocation7 + $0x14] sm:$0xf]
        %v459 = vld [vmem:[#allocation7 + $0x18] sm:$0xf]
        %v460 = vld [vmem:[#allocation7 + $0x1c] sm:$0xf]
        %v461 = vld [vmem:[#allocation7 + $0x20] sm:$0xf]
        %v462 = vld [vmem:[#allocation7 + $0x24] sm:$0xf]
        %v463 = vld [vmem:[#allocation7 + $0x28] sm:$0xf]
        %v464 = vld [vmem:[#allocation7 + $0x2c] sm:$0xf]
        %v465 = vld [vmem:[#allocation7 + $0x30] sm:$0xf]
        %v466 = vld [vmem:[#allocation7 + $0x34] sm:$0xf]
        %v467 = vld [vmem:[#allocation7 + $0x38] sm:$0xf]
        %v468 = vld [vmem:[#allocation7 + $0x3c] sm:$0xf]
        %v469 = vld [vmem:[%s4] sm:$0x1]
        %v471 = vlaneseq
        %v472 = vshrl.u32 %v471, 7
        %v473 = vsub.s32 0, %v472
        %v474 = vrot.slane %v469, %v473
        %v492 = vunpack.c.l.b16 %v453
        %v493 = vunpack.c.l.b16 %v454
        %v494 = vunpack.c.l.b16 %v455
        %v495 = vunpack.c.l.b16 %v456
        %v496 = vunpack.c.l.b16 %v457
        %v497 = vunpack.c.l.b16 %v458
        %v498 = vunpack.c.l.b16 %v459
        %v499 = vunpack.c.l.b16 %v460
        %v500 = vunpack.c.l.b16 %v461
        %v501 = vunpack.c.l.b16 %v462
        %v502 = vunpack.c.l.b16 %v463
        %v503 = vunpack.c.l.b16 %v464
        %v504 = vunpack.c.l.b16 %v465
        %v505 = vunpack.c.l.b16 %v466
        %v506 = vunpack.c.l.b16 %v467
        %v507 = vunpack.c.l.b16 %v468
        %v508 = vpack.c.b16 %v493, %v492
        %v509 = vpack.c.b16 %v495, %v494
        %v510 = vpack.c.b16 %v497, %v496
        %v511 = vpack.c.b16 %v499, %v498
        %v512 = vpack.c.b16 %v501, %v500
        %v513 = vpack.c.b16 %v503, %v502
        %v514 = vpack.c.b16 %v505, %v504
        %v515 = vpack.c.b16 %v507, %v506
        %524 = vmatprep.subr.bf16.mxu0 0
        %525 = vmatpush1.bf16.msra.mxu0 %v508
        %526 = vmatprep.subr.bf16.mxu0 0
        %527 = vmatpush1.bf16.msra.mxu0 %v509
        %528 = vmatprep.subr.bf16.mxu0 0
        %529 = vmatpush1.bf16.msra.mxu0 %v510
        %530 = vmatprep.subr.bf16.mxu0 0
        %531 = vmatpush1.bf16.msra.mxu0 %v511
        %532 = vmatprep.subr.bf16.mxu0 0
        %533 = vmatpush1.bf16.msra.mxu0 %v512
        %534 = vmatprep.subr.bf16.mxu0 0
        %535 = vmatpush1.bf16.msra.mxu0 %v513
        %536 = vmatprep.subr.bf16.mxu0 0
        %537 = vmatpush1.bf16.msra.mxu0 %v514
        %538 = vmatprep.subr.bf16.mxu0 0
        %539 = vmatpush1.bf16.msra.mxu0 %v515
        %540 = vmatprep.subr.bf16.mxu0 0
        %541 = vmatpush1.bf16.msra.mxu0 0
        %542 = vmatprep.subr.bf16.mxu0 0
        %543 = vmatpush1.bf16.msra.mxu0 0
        %544 = vmatprep.subr.bf16.mxu0 0
        %545 = vmatpush1.bf16.msra.mxu0 0
        %546 = vmatprep.subr.bf16.mxu0 0
        %547 = vmatpush1.bf16.msra.mxu0 0
        %548 = vmatprep.subr.bf16.mxu0 0
        %549 = vmatpush1.bf16.msra.mxu0 0
        %550 = vmatprep.subr.bf16.mxu0 0
        %551 = vmatpush1.bf16.msra.mxu0 0
        %552 = vmatprep.subr.bf16.mxu0 0
        %553 = vmatpush1.bf16.msra.mxu0 0
        %554 = vmatprep.subr.bf16.mxu0 0
        %555 = vmatpush1.bf16.msra.mxu0 0
        %556 = vmatprep.mubr.bf16.mxu0 0
        %557 = vmatmul.mubr.bf16.gmra.mrb[0].mxu0 %v452
        %v558 = vpop.f32.mrb[0].mxu0
        %v559 = vadd.f32 %v474, %v558
        %v560 = vpop.f32.mrb[0].mxu0
        %v561 = vpop.f32.mrb[0].mxu0
        %v562 = vpop.f32.mrb[0].mxu0
        %563 = vdwg.mxu0
        %v564 = vpack.c.bf16 %v559, %v559
        %v565 = vld [vmem:[#allocation8] sm:$0xff]
        %v566 = vld [vmem:[#allocation8 + $0x8] sm:$0xff]
        %v567 = vld [vmem:[#allocation8 + $0x10] sm:$0xff]
        %v568 = vld [vmem:[#allocation8 + $0x18] sm:$0xff]
        %v569 = vld [vmem:[#allocation8 + $0x20] sm:$0xff]
        %v570 = vld [vmem:[#allocation8 + $0x28] sm:$0xff]
        %v571 = vld [vmem:[#allocation8 + $0x30] sm:$0xff]
        %v572 = vld [vmem:[#allocation8 + $0x38] sm:$0xff]
        %v573 = vld [vmem:[#allocation8 + $0x40] sm:$0xff]
        %v574 = vld [vmem:[#allocation8 + $0x48] sm:$0xff]
        %v575 = vld [vmem:[#allocation8 + $0x50] sm:$0xff]
        %v576 = vld [vmem:[#allocation8 + $0x58] sm:$0xff]
        %v577 = vld [vmem:[#allocation8 + $0x60] sm:$0xff]
        %v578 = vld [vmem:[#allocation8 + $0x68] sm:$0xff]
        %v579 = vld [vmem:[#allocation8 + $0x70] sm:$0xff]
        %v580 = vld [vmem:[#allocation8 + $0x78] sm:$0xff]
        %v581 = vld [vmem:[%s6] sm:$0x3]
        %v583 = vlaneseq
        %v584 = vshrl.u32 %v583, 7
        %v585 = vsub.s32 0, %v584
        %v586 = vrot.slane %v581, %v585
        %v587 = vlaneseq
        %v588 = vshrl.u32 %v587, 7
        %v589 = vsub.s32 1, %v588
        %v590 = vrot.slane %v581, %v589
        %v609 = vunpack.c.l.b16 %v565
        %v610 = vunpack.c.h.b16 %v565
        %v611 = vunpack.c.l.b16 %v566
        %v612 = vunpack.c.h.b16 %v566
        %v613 = vunpack.c.l.b16 %v567
        %v614 = vunpack.c.h.b16 %v567
        %v615 = vunpack.c.l.b16 %v568
        %v616 = vunpack.c.h.b16 %v568
        %v617 = vunpack.c.l.b16 %v569
        %v618 = vunpack.c.h.b16 %v569
        %v619 = vunpack.c.l.b16 %v570
        %v620 = vunpack.c.h.b16 %v570
        %v621 = vunpack.c.l.b16 %v571
        %v622 = vunpack.c.h.b16 %v571
        %v623 = vunpack.c.l.b16 %v572
        %v624 = vunpack.c.h.b16 %v572
        %v625 = vunpack.c.l.b16 %v573
        %v626 = vunpack.c.h.b16 %v573
        %v627 = vunpack.c.l.b16 %v574
        %v628 = vunpack.c.h.b16 %v574
        %v629 = vunpack.c.l.b16 %v575
        %v630 = vunpack.c.h.b16 %v575
        %v631 = vunpack.c.l.b16 %v576
        %v632 = vunpack.c.h.b16 %v576
        %v633 = vunpack.c.l.b16 %v577
        %v634 = vunpack.c.h.b16 %v577
        %v635 = vunpack.c.l.b16 %v578
        %v636 = vunpack.c.h.b16 %v578
        %v637 = vunpack.c.l.b16 %v579
        %v638 = vunpack.c.h.b16 %v579
        %v639 = vunpack.c.l.b16 %v580
        %v640 = vunpack.c.h.b16 %v580
        %v641 = vpack.c.b16 %v611, %v609
        %v642 = vpack.c.b16 %v612, %v610
        %v643 = vpack.c.b16 %v615, %v613
        %v644 = vpack.c.b16 %v616, %v614
        %v645 = vpack.c.b16 %v619, %v617
        %v646 = vpack.c.b16 %v620, %v618
        %v647 = vpack.c.b16 %v623, %v621
        %v648 = vpack.c.b16 %v624, %v622
        %v649 = vpack.c.b16 %v627, %v625
        %v650 = vpack.c.b16 %v628, %v626
        %v651 = vpack.c.b16 %v631, %v629
        %v652 = vpack.c.b16 %v632, %v630
        %v653 = vpack.c.b16 %v635, %v633
        %v654 = vpack.c.b16 %v636, %v634
        %v655 = vpack.c.b16 %v639, %v637
        %v656 = vpack.c.b16 %v640, %v638
        %673 = vmatprep.subr.bf16.mxu0 %v642
        %674 = vmatpush1.bf16.msra.mxu0 %v641
        %675 = vmatprep.subr.bf16.mxu0 %v644
        %676 = vmatpush1.bf16.msra.mxu0 %v643
        %677 = vmatprep.subr.bf16.mxu0 %v646
        %678 = vmatpush1.bf16.msra.mxu0 %v645
        %679 = vmatprep.subr.bf16.mxu0 %v648
        %680 = vmatpush1.bf16.msra.mxu0 %v647
        %681 = vmatprep.subr.bf16.mxu0 %v650
        %682 = vmatpush1.bf16.msra.mxu0 %v649
        %683 = vmatprep.subr.bf16.mxu0 %v652
        %684 = vmatpush1.bf16.msra.mxu0 %v651
        %685 = vmatprep.subr.bf16.mxu0 %v654
        %686 = vmatpush1.bf16.msra.mxu0 %v653
        %687 = vmatprep.subr.bf16.mxu0 %v656
        %688 = vmatpush1.bf16.msra.mxu0 %v655
        %689 = vmatprep.subr.bf16.mxu0 0
        %690 = vmatpush1.bf16.msra.mxu0 0
        %691 = vmatprep.subr.bf16.mxu0 0
        %692 = vmatpush1.bf16.msra.mxu0 0
        %693 = vmatprep.subr.bf16.mxu0 0
        %694 = vmatpush1.bf16.msra.mxu0 0
        %695 = vmatprep.subr.bf16.mxu0 0
        %696 = vmatpush1.bf16.msra.mxu0 0
        %697 = vmatprep.subr.bf16.mxu0 0
        %698 = vmatpush1.bf16.msra.mxu0 0
        %699 = vmatprep.subr.bf16.mxu0 0
        %700 = vmatpush1.bf16.msra.mxu0 0
        %701 = vmatprep.subr.bf16.mxu0 0
        %702 = vmatpush1.bf16.msra.mxu0 0
        %703 = vmatprep.subr.bf16.mxu0 0
        %704 = vmatpush1.bf16.msra.mxu0 0
        %705 = vmatprep.mubr.bf16.mxu0 0
        %706 = vmatmul.mubr.bf16.gmra.mrb[0].mxu0 %v564
        %v707 = vpop.f32.mrb[0].mxu0
        %v708 = vadd.f32 %v586, %v707
        %v709 = vpop.f32.mrb[0].mxu0
        %v710 = vadd.f32 %v590, %v709
        %v711 = vpop.f32.mrb[0].mxu0
        %v712 = vpop.f32.mrb[0].mxu0
        %713 = vdwg.mxu0
        %v714 = vpack.c.bf16 %v708, %v708
        %v715 = vpack.c.bf16 %v710, %v710
        %v718 = vunpack.c.l.b16 %v714
        %v719 = vunpack.c.l.b16 %v715
        %v720 = vpack.c.b16 %v719, %v718
        %722 = vst [vmem:[%s337] sm:$0xff] %v720
        %s723 = sand.u32 %s186, 1
        %s724 = scalar_lea.sflag [#allocation4], %s723
        %s725 = sand.u32 %s186, 1
        %s726 = smul.addr %s725, 8
        %s727 = scalar_lea.vmem [#allocation10], %s726
        // Predicated region
        $region65: #{tpu_custom_call.1} parent=47 // pred_check
          %p728 = pneg %p196
        $region66: #{tpu_custom_call.1} parent=47 // pred_check_branch
          %730 = sbr.rel (%p728) target = $region68
        $region67: #{tpu_custom_call.1} parent=47 // pred_region
          %s732 = ssub.s32 128, 128
          %733 = vsyncadd %s724, %s732
          %s734 = smul.addr %s26, 2
          %s735 = smul.addr %s734, 64
          %s736 = scalar_lea.hbm %s7, %s735
          %s738 = sshll.u32 %s727, 4
          %s739 = int_to_ptr.vmem [resolvable:$true] %s738
          %741 = dma.vmem_to_hbm [thread:$0]  %s739, 128, %s736, %s724
        $region68: #{tpu_custom_call.1} parent=47 // pred_fallthru
          _
      $region48: #{tpu_custom_call.1} parent=5 // pred_fallthru
        _
      %p742 = scmp.le.s32.totalorder 2, %s21
      // Predicated region
      $region69: #{tpu_custom_call.1} parent=5 // pred_check
        %p743 = pneg %p742
      $region70: #{tpu_custom_call.1} parent=5 // pred_check_branch
        %745 = sbr.rel (%p743) target = $region72
      $region71: #{tpu_custom_call.1} parent=5 // pred_region
        %s746 = ssub.s32 %s21, 2
        // Predicated region
        $region73: #{tpu_custom_call.1} parent=71 // pred_check
          %p747 = pneg %p202
        $region74: #{tpu_custom_call.1} parent=71 // pred_check_branch
          %749 = sbr.rel (%p747) target = $region76
        $region75: #{tpu_custom_call.1} parent=71 // pred_region
          %s750 = sand.u32 %s187, 1
          %s751 = scalar_lea.sflag [#allocation4], %s750
          %s752 = sand.u32 %s187, 1
          %s753 = smul.addr %s752, 8
          %s754 = scalar_lea.vmem [#allocation10], %s753
          %755 = dma.done %s751, 128
        $region76: #{tpu_custom_call.1} parent=71 // pred_fallthru
          _
      $region72: #{tpu_custom_call.1} parent=5 // pred_fallthru
        _
    $region6: #{tpu_custom_call.1} parent=1 // loop_footer
      %s25 = sadd.s32 1, %s21
    $region7: #{tpu_custom_call.1} parent=1 // loop_footer_branch
      %20 = sbr.rel target = $region3
    $region8: #{tpu_custom_call.1} parent=1 // loop_exit
      _
    %756 = vsyncpa [#allocation3], 1
    %s757 = scalar_lea.sflag [#allocation3], 1
    %758 = vsyncpa %s757, 1
    %759 = vsyncpa [#allocation6], 1
    %760 = vsyncpa [#allocation9], 1
    %761 = vsyncpa [#allocation4], 1
    %s762 = scalar_lea.sflag [#allocation4], 1
    %763 = vsyncpa %s762, 1

</llo_original>
